<compile_context>
chip_gen: v6e
topology: v6e:2x2x1
jax: 0.10.0
libtpu: 0.0.40
codegen_flags: <defaults>
</compile_context>

<pallas_src>
import jax
import jax.numpy as jnp
from jax.experimental import pallas as pl
from jax.experimental.pallas import tpu as pltpu

HIDDEN = 64          # logical hidden width of the PyTorch module
HIDDEN_PAD = 128     # padded to a full vreg lane width (matches 128-wide MXU on all gens)
OUT_PAD = 128        # padded output lane width used for the *compute* only (W2/b2 columns)


def _round_up(x, m):
    return (x + m - 1) // m * m


# ----------------------------------------------------------------------------- kernel ----
def dqn_kernel(x_ref, w1_ref, b1_ref, w2_ref, b2_ref, o_ref):
    # x_ref:  (TB, d_in)            batch tile (f32 or bf16)
    # w1_ref: (d_in, 128)           hidden zero-padded 64 -> 128     (f32 or bf16)
    # b1_ref: (1, 128)   f32
    # w2_ref: (128, 128)            rows >= 64 and cols >= n_actions are zero
    # b2_ref: (1, 128)   f32
    # o_ref:  (TB, n_actions) f32   narrow output tile (no 128-lane HBM writeback)
    n_actions = o_ref.shape[-1]
    x = x_ref[...].astype(w1_ref.dtype)
    h = jnp.dot(x, w1_ref[...], preferred_element_type=jnp.float32) + b1_ref[...]
    h = jnp.maximum(h, 0.0)                      # ReLU on the f32 accumulator (VPU)
    out = jnp.dot(h.astype(w2_ref.dtype), w2_ref[...],
                  preferred_element_type=jnp.float32) + b2_ref[...]
    o_ref[...] = out[:, :n_actions].astype(o_ref.dtype)


# ------------------------------------------------------------------------- tile sizing ---
def _choose_tile_b(B, d_in, n_actions, x_itemsize, w_itemsize):
    """Pick the batch tile: big (amortize ~0.35us/step), VMEM-budgeted, grid>=2 when B>8."""
    # Stay well under v5e's 16 MiB default scoped VMEM (also fine for v7x's 64 MiB total).
    budget = 12 * 1024 * 1024
    resident = (2 * d_in * HIDDEN_PAD * w_itemsize        # W1 (double-buffered by default)
                + 2 * HIDDEN_PAD * OUT_PAD * w_itemsize   # W2
                + 4 * (HIDDEN_PAD + OUT_PAD) * 4)         # biases
    per_row = 2 * d_in * x_itemsize + 2 * n_actions * 4   # x tile + out tile, double-buffered
    cap = max(8, (budget - resident) // per_row)
    cap = min(int(cap), 1024)                              # v6e sweet spot; plenty for others
    cap = (cap // 8) * 8

    if B > 8:
        # Ensure the grid has >= 2 steps so the "parallel" batch axis can shard across
        # v7x's two TensorCores (megacore); for larger B this also keeps tiles big.
        half = _round_up(pl.cdiv(B, 2), 8)
        tile_b = min(cap, half)
    else:
        tile_b = 8
    return max(8, min(tile_b, _round_up(B, 8)))


# ------------------------------------------------------------------------------ params ---
def prepare_params(w1, b1, w2, b2, dtype=jnp.float32):
    """One-time layout plumbing (hoisted out of the forward pass).

    w1: [d_in, 64], b1: [64] or [1, 64], w2: [64, n_actions], b2: [n_actions] or [1, n_actions].
    Weights are cast to `dtype` (f32 or bf16); biases stay f32 (added to the f32 accumulator).
    Zero padding is exact: relu(0)=0 and zero W2 rows/cols + zero b2 lanes contribute 0,
    and padded output columns are never stored.
    """
    d_in, hidden = w1.shape
    assert hidden == HIDDEN and w2.shape[0] == HIDDEN
    n_actions = w2.shape[-1]
    assert n_actions <= OUT_PAD
    b1 = jnp.asarray(b1, jnp.float32).reshape(1, HIDDEN)
    b2 = jnp.asarray(b2, jnp.float32).reshape(1, n_actions)
    w1_p = jnp.pad(jnp.asarray(w1, dtype), ((0, 0), (0, HIDDEN_PAD - HIDDEN)))
    b1_p = jnp.pad(b1, ((0, 0), (0, HIDDEN_PAD - HIDDEN)))
    w2_p = jnp.pad(jnp.asarray(w2, dtype),
                   ((0, HIDDEN_PAD - HIDDEN), (0, OUT_PAD - n_actions)))
    b2_p = jnp.pad(b2, ((0, 0), (0, OUT_PAD - n_actions)))
    return {"w1": w1_p, "b1": b1_p, "w2": w2_p, "b2": b2_p,
            "n_actions": n_actions, "d_in": d_in}


def init_raw_params(key, input_size, n_actions):
    """PyTorch nn.Linear-style init (uniform(+-1/sqrt(fan_in))), stored as [in, out]."""
    k1, k2, k3, k4 = jax.random.split(key, 4)
    bound1 = 1.0 / (input_size ** 0.5)
    bound2 = 1.0 / (HIDDEN ** 0.5)
    w1 = jax.random.uniform(k1, (input_size, HIDDEN), jnp.float32, -bound1, bound1)
    b1 = jax.random.uniform(k2, (1, HIDDEN), jnp.float32, -bound1, bound1)
    w2 = jax.random.uniform(k3, (HIDDEN, n_actions), jnp.float32, -bound2, bound2)
    b2 = jax.random.uniform(k4, (1, n_actions), jnp.float32, -bound2, bound2)
    return w1, b1, w2, b2


# ----------------------------------------------------------------------------- forward ---
def dqn_1d_forward(x, params, *, tile_b=None):
    """x: [B, input_size] (f32, or bf16 for the streaming path).  Returns [B, n_actions] f32."""
    w1_p, b1_p, w2_p, b2_p = params["w1"], params["b1"], params["w2"], params["b2"]
    n_actions = params["n_actions"]
    B, d_in = x.shape
    assert w1_p.shape == (d_in, HIDDEN_PAD)

    if tile_b is None:
        tile_b = _choose_tile_b(B, d_in, n_actions,
                                jnp.dtype(x.dtype).itemsize,
                                jnp.dtype(w1_p.dtype).itemsize)
    tile_b = max(8, _round_up(tile_b, 8))
    grid = (pl.cdiv(B, tile_b),)     # ragged last block handled by Pallas (masked writeback)

    return pl.pallas_call(
        dqn_kernel,
        out_shape=jax.ShapeDtypeStruct((B, n_actions), jnp.float32),
        grid_spec=pltpu.PrefetchScalarGridSpec(
            num_scalar_prefetch=0,
            grid=grid,
            in_specs=[
                pl.BlockSpec((tile_b, d_in), lambda i: (i, 0)),           # x tile
                pl.BlockSpec((d_in, HIDDEN_PAD), lambda i: (0, 0)),       # W1 (resident)
                pl.BlockSpec((1, HIDDEN_PAD), lambda i: (0, 0)),          # b1
                pl.BlockSpec((HIDDEN_PAD, OUT_PAD), lambda i: (0, 0)),    # W2 (resident)
                pl.BlockSpec((1, OUT_PAD), lambda i: (0, 0)),             # b2
            ],
            out_specs=pl.BlockSpec((tile_b, n_actions), lambda i: (i, 0)),  # narrow output
        ),
        compiler_params=pltpu.CompilerParams(
            dimension_semantics=("parallel",),   # batch axis shards across v7x's 2 TCs
        ),
    )(x, w1_p, b1_p, w2_p, b2_p)


# -------------------------------------------------------------------------------- main ---
if __name__ == "__main__":
    input_size = 32
    n_actions = 4
    batch = 16

    key = jax.random.PRNGKey(0)
    kx, kp = jax.random.split(key)
    x = jax.random.normal(kx, (batch, input_size), jnp.float32)
    w1, b1, w2, b2 = init_raw_params(kp, input_size, n_actions)

    # Pure-JAX reference (same math as the PyTorch module).
    ref = jnp.maximum(x @ w1 + b1, 0.0) @ w2 + b2

    # --- f32 path (bit-matched to the PyTorch module's numerics) ----------------------
    params_f32 = prepare_params(w1, b1, w2, b2, dtype=jnp.float32)
    out = jax.block_until_ready(dqn_1d_forward(x, params_f32))
    assert out.shape == (batch, n_actions)
    assert jnp.allclose(out, ref, atol=1e-5, rtol=1e-5), "f32 mismatch vs reference"

    # --- ragged batch (grid = cdiv, last partial tile masked on writeback) ------------
    x_ragged = x[:13]
    out_ragged = jax.block_until_ready(dqn_1d_forward(x_ragged, params_f32))
    assert out_ragged.shape == (13, n_actions)
    assert jnp.allclose(out_ragged, ref[:13], atol=1e-5, rtol=1e-5), "ragged mismatch"

    # --- bf16 streaming path (x and weights stored bf16, f32 MXU accumulation) --------
    params_bf16 = prepare_params(w1, b1, w2, b2, dtype=jnp.bfloat16)
    x_bf16 = x.astype(jnp.bfloat16)   # simulates x already stored as bf16 upstream
    out_bf16 = jax.block_until_ready(dqn_1d_forward(x_bf16, params_bf16))
    assert out_bf16.shape == (batch, n_actions)
    assert jnp.allclose(out_bf16, ref, atol=5e-2, rtol=5e-2), "bf16 mismatch vs reference"

    print("KERNEL_OK")
</pallas_src>

<mosaic_0001>
module attributes {stable_mosaic.version = 11 : i64} {
  func.func @dqn_kernel(%arg0: i32, %arg1: memref<8x32xf32, #tpu.memory_space<vmem>>, %arg2: memref<32x128xf32, #tpu.memory_space<vmem>>, %arg3: memref<1x128xf32, #tpu.memory_space<vmem>>, %arg4: memref<128x128xf32, #tpu.memory_space<vmem>>, %arg5: memref<1x128xf32, #tpu.memory_space<vmem>>, %arg6: memref<8x4xf32, #tpu.memory_space<vmem>>) attributes {dimension_semantics = [#tpu.dimension_semantics<parallel>], iteration_bounds = array<i64: 2>, scalar_prefetch = 0 : i64, scratch_operands = 0 : i64, tpu.core_type = #tpu.core_type<tc>, window_params = [{transform_indices = @transform_0, window_bounds = array<i64: 8, 32>}, {pipeline_mode = #tpu.pipeline_mode<synchronous>, transform_indices = @transform_1, window_bounds = array<i64: 32, 128>}, {pipeline_mode = #tpu.pipeline_mode<synchronous>, transform_indices = @transform_2, window_bounds = array<i64: 1, 128>}, {pipeline_mode = #tpu.pipeline_mode<synchronous>, transform_indices = @transform_3, window_bounds = array<i64: 128, 128>}, {pipeline_mode = #tpu.pipeline_mode<synchronous>, transform_indices = @transform_4, window_bounds = array<i64: 1, 128>}, {transform_indices = @transform_5, window_bounds = array<i64: 8, 4>}]} {
    %c0 = arith.constant 0 : index
    %c0_0 = arith.constant 0 : index
    %0 = vector.load %arg1[%c0, %c0_0] : memref<8x32xf32, #tpu.memory_space<vmem>>, vector<8x32xf32>
    %c0_1 = arith.constant 0 : index
    %c0_2 = arith.constant 0 : index
    %1 = vector.load %arg2[%c0_1, %c0_2] : memref<32x128xf32, #tpu.memory_space<vmem>>, vector<32x128xf32>
    %cst = arith.constant dense<0.000000e+00> : vector<8x128xf32>
    %2 = tpu.matmul %0, %1, %cst {dimension_numbers = #tpu.dot_dimension_numbers<[1], [0], [0], [1], [0, 0, 1, 1], [], []>} : vector<8x32xf32>, vector<32x128xf32>, vector<8x128xf32> -> vector<8x128xf32>
    %c0_3 = arith.constant 0 : index
    %c0_4 = arith.constant 0 : index
    %3 = vector.load %arg3[%c0_3, %c0_4] : memref<1x128xf32, #tpu.memory_space<vmem>>, vector<1x128xf32>
    %4 = vector.broadcast %3 : vector<1x128xf32> to vector<8x128xf32>
    %5 = arith.addf %2, %4 : vector<8x128xf32>
    %cst_5 = arith.constant 0.000000e+00 : f32
    %6 = vector.broadcast %cst_5 : f32 to vector<8x128xf32>
    %7 = arith.maximumf %5, %6 : vector<8x128xf32>
    %c0_6 = arith.constant 0 : index
    %c0_7 = arith.constant 0 : index
    %8 = vector.load %arg4[%c0_6, %c0_7] : memref<128x128xf32, #tpu.memory_space<vmem>>, vector<128x128xf32>
    %cst_8 = arith.constant dense<0.000000e+00> : vector<8x128xf32>
    %9 = tpu.matmul %7, %8, %cst_8 {dimension_numbers = #tpu.dot_dimension_numbers<[1], [0], [0], [1], [0, 0, 1, 1], [], []>} : vector<8x128xf32>, vector<128x128xf32>, vector<8x128xf32> -> vector<8x128xf32>
    %c0_9 = arith.constant 0 : index
    %c0_10 = arith.constant 0 : index
    %10 = vector.load %arg5[%c0_9, %c0_10] : memref<1x128xf32, #tpu.memory_space<vmem>>, vector<1x128xf32>
    %11 = vector.broadcast %10 : vector<1x128xf32> to vector<8x128xf32>
    %12 = arith.addf %9, %11 : vector<8x128xf32>
    %13 = vector.extract_strided_slice %12 {offsets = [0, 0], sizes = [8, 4], strides = [1, 1]} : vector<8x128xf32> to vector<8x4xf32>
    %c0_11 = arith.constant 0 : index
    %c0_12 = arith.constant 0 : index
    %14 = vector.load %arg6[%c0_11, %c0_12] : memref<8x4xf32, #tpu.memory_space<vmem>>, vector<8x4xf32>
    tpu.vector_store %arg6[%c0_11, %c0_12], %13 {strides = array<i32>} : memref<8x4xf32, #tpu.memory_space<vmem>>, vector<8x4xf32>,
    return
  }
  func.func @transform_0(%arg0: i32) -> (i32, i32) {
    %c0_i32 = arith.constant 0 : i32
    %c0_i32_0 = arith.constant 0 : i32
    return %arg0, %c0_i32 : i32, i32
  }
  func.func @transform_1(%arg0: i32) -> (i32, i32) {
    %c0_i32 = arith.constant 0 : i32
    %c0_i32_0 = arith.constant 0 : i32
    %c0_i32_1 = arith.constant 0 : i32
    return %c0_i32, %c0_i32_0 : i32, i32
  }
  func.func @transform_2(%arg0: i32) -> (i32, i32) {
    %c0_i32 = arith.constant 0 : i32
    %c0_i32_0 = arith.constant 0 : i32
    %c0_i32_1 = arith.constant 0 : i32
    return %c0_i32, %c0_i32_0 : i32, i32
  }
  func.func @transform_3(%arg0: i32) -> (i32, i32) {
    %c0_i32 = arith.constant 0 : i32
    %c0_i32_0 = arith.constant 0 : i32
    %c0_i32_1 = arith.constant 0 : i32
    return %c0_i32, %c0_i32_0 : i32, i32
  }
  func.func @transform_4(%arg0: i32) -> (i32, i32) {
    %c0_i32 = arith.constant 0 : i32
    %c0_i32_0 = arith.constant 0 : i32
    %c0_i32_1 = arith.constant 0 : i32
    return %c0_i32, %c0_i32_0 : i32, i32
  }
  func.func @transform_5(%arg0: i32) -> (i32, i32) {
    %c0_i32 = arith.constant 0 : i32
    %c0_i32_0 = arith.constant 0 : i32
    return %arg0, %c0_i32 : i32, i32
  }
}

</mosaic_0001>

<llo_original>
// kernel: tpu_custom_call.1
$region0: #{tpu_custom_call.1}
  #allocation0 [shape = 'u32[]', space=smem, size = 0x4, offset = 0x4, fixed_abs, tag = 'smem constant byte address 0x4 - core index']
  #allocation1 [shape = 'u32[144,128]{1,0:T(1,128)}', space=vmem, size = 0x12000, scoped, tag = 'internal scratch']
  %s0 = inlined_call_operand.hbm [shape: f32[16,32], index: 0, kind: input, shape index: {}]
  %s1 = inlined_call_operand.hbm [shape: f32[32,128], index: 1, kind: input, shape index: {}]
  %s2 = inlined_call_operand.vmem [shape: f32[1,128], index: 2, kind: input, shape index: {}]
  %s3 = inlined_call_operand.hbm [shape: f32[128,128], index: 3, kind: input, shape index: {}]
  %s4 = inlined_call_operand.vmem [shape: f32[1,128], index: 4, kind: input, shape index: {}]
  %s5 = inlined_call_operand.vmem [shape: f32[16,4], index: 5, kind: output, shape index: {}]
  %s6 = sld [smem:[#allocation0]]
  $region65: #{tpu_custom_call.1} parent=0
    _
  %s8 = ssub.s32 1, %s6
  %s9 = scalar_select 0, %s8, %s6
  $region1: #{tpu_custom_call.1} parent=0
    #allocation2 [shape = 'u8[8192]{0}', space=vmem, size = 0x2000, scoped, tag = 'input window, operand 0']
    #allocation3 [shape = 's32[2]{0}', space=sflag, size = 0x8, scoped, tag = 'scoped memory for tpu_custom_call.1']
    #allocation4 [shape = 'u8[16384]{0}', space=vmem, size = 0x4000, scoped, tag = 'input window, operand 1, single buffered']
    #allocation5 [shape = 's32[1]{0}', space=sflag, size = 0x4, scoped, tag = 'scoped memory for tpu_custom_call.1']
    #allocation6 [shape = 'u8[65536]{0}', space=vmem, size = 0x10000, scoped, tag = 'input window, operand 3, single buffered']
    %10 = vsyncpa [#allocation3], 0
    %s11 = scalar_lea.sflag [#allocation3], 1
    %12 = vsyncpa %s11, 0
    %13 = vsyncpa [#allocation5], 0
    loop: start=0, step=1, limit=4
    $region2: #{tpu_custom_call.1} parent=1 // loop_pre_header
      _
    $region3: #{tpu_custom_call.1} parent=1 // loop_header
      %s15 = sphi 0, %s19
      %p16 = scmp.ge.s32.totalorder %s15, 4
      %s25 = sphi 0, %s27
      %s28 = sphi 0, %s25
      %s29 = sphi 0, %s28
      %s45 = sphi 0, %s29
      %s49 = sphi 0, %s49
      %s51 = sphi 0, %s49
      %s52 = sphi 0, %s51
      %s66 = sphi 0, %s52
      %s70 = sphi 0, %s70
      %s72 = sphi 0, %s70
      %s73 = sphi 0, %s72
      %s87 = sphi 0, %s73
      %s91 = sphi 0, %s91
      %s93 = sphi 0, %s91
      %s94 = sphi 0, %s93
      %s108 = sphi 0, %s94
      %s112 = sphi 0, %s112
      %s114 = sphi 0, %s112
      %s115 = sphi 0, %s114
      %s129 = sphi 0, %s115
      %s135 = sphi 0, %s137
      %s138 = sphi 0, %s135
      %s139 = sphi 0, %s138
      %s155 = sphi 0, %s139
    $region4: #{tpu_custom_call.1} parent=1 // loop_header_branch
      %18 = sbr.rel (%p16) target = $region8
    $region5: #{tpu_custom_call.1} parent=1 // loop_body
      %s20 = ssub.s32 %s15, 1
      %s21 = ssub.s32 %s15, 2
      %s22 = sadd.s32 %s15, 1
      %s23 = ssub.s32 %s15, %s22
      %p24 = scmp.eq.s32.totalorder %s23, 0
      %s26 = sadd.s32 %s25, 1
      %s27 = scalar_select %p24, %s25, %s26
      %p30 = pneg %p24
      %p31 = scmp.eq.s32.totalorder %s15, 1
      %p32 = por %p30, %p31
      %p33 = scmp.ne.s32.totalorder %s25, %s28
      %p34 = scmp.eq.s32.totalorder %s15, 0
      %p35 = por %p33, %p34
      %p36 = scmp.ne.s32.totalorder %s25, %s28
      %p37 = scmp.eq.s32.totalorder %s20, 1
      %p38 = por %p36, %p37
      %p39 = scmp.ne.s32.totalorder %s28, %s29
      %p40 = scmp.eq.s32.totalorder %s20, 0
      %p41 = por %p39, %p40
      %p42 = scmp.ne.s32.totalorder %s28, %s29
      %p43 = scmp.eq.s32.totalorder %s21, 1
      %p44 = por %p42, %p43
      %p46 = scmp.ne.s32.totalorder %s29, %s45
      %p47 = scmp.eq.s32.totalorder %s21, 0
      %p48 = por %p46, %p47
      %s50 = sadd.s32 %s49, 1
      %p53 = scmp.eq.s32.totalorder %s15, 1
      %p54 = scmp.ne.s32.totalorder %s49, %s51
      %p55 = scmp.eq.s32.totalorder %s15, 0
      %p56 = por %p54, %p55
      %p57 = scmp.ne.s32.totalorder %s49, %s51
      %p58 = scmp.eq.s32.totalorder %s20, 1
      %p59 = por %p57, %p58
      %p60 = scmp.ne.s32.totalorder %s51, %s52
      %p61 = scmp.eq.s32.totalorder %s20, 0
      %p62 = por %p60, %p61
      %p63 = scmp.ne.s32.totalorder %s51, %s52
      %p64 = scmp.eq.s32.totalorder %s21, 1
      %p65 = por %p63, %p64
      %p67 = scmp.ne.s32.totalorder %s52, %s66
      %p68 = scmp.eq.s32.totalorder %s21, 0
      %p69 = por %p67, %p68
      %s71 = sadd.s32 %s70, 1
      %p74 = scmp.eq.s32.totalorder %s15, 1
      %p75 = scmp.ne.s32.totalorder %s70, %s72
      %p76 = scmp.eq.s32.totalorder %s15, 0
      %p77 = por %p75, %p76
      %p78 = scmp.ne.s32.totalorder %s70, %s72
      %p79 = scmp.eq.s32.totalorder %s20, 1
      %p80 = por %p78, %p79
      %p81 = scmp.ne.s32.totalorder %s72, %s73
      %p82 = scmp.eq.s32.totalorder %s20, 0
      %p83 = por %p81, %p82
      %p84 = scmp.ne.s32.totalorder %s72, %s73
      %p85 = scmp.eq.s32.totalorder %s21, 1
      %p86 = por %p84, %p85
      %p88 = scmp.ne.s32.totalorder %s73, %s87
      %p89 = scmp.eq.s32.totalorder %s21, 0
      %p90 = por %p88, %p89
      %s92 = sadd.s32 %s91, 1
      %p95 = scmp.eq.s32.totalorder %s15, 1
      %p96 = scmp.ne.s32.totalorder %s91, %s93
      %p97 = scmp.eq.s32.totalorder %s15, 0
      %p98 = por %p96, %p97
      %p99 = scmp.ne.s32.totalorder %s91, %s93
      %p100 = scmp.eq.s32.totalorder %s20, 1
      %p101 = por %p99, %p100
      %p102 = scmp.ne.s32.totalorder %s93, %s94
      %p103 = scmp.eq.s32.totalorder %s20, 0
      %p104 = por %p102, %p103
      %p105 = scmp.ne.s32.totalorder %s93, %s94
      %p106 = scmp.eq.s32.totalorder %s21, 1
      %p107 = por %p105, %p106
      %p109 = scmp.ne.s32.totalorder %s94, %s108
      %p110 = scmp.eq.s32.totalorder %s21, 0
      %p111 = por %p109, %p110
      %s113 = sadd.s32 %s112, 1
      %p116 = scmp.eq.s32.totalorder %s15, 1
      %p117 = scmp.ne.s32.totalorder %s112, %s114
      %p118 = scmp.eq.s32.totalorder %s15, 0
      %p119 = por %p117, %p118
      %p120 = scmp.ne.s32.totalorder %s112, %s114
      %p121 = scmp.eq.s32.totalorder %s20, 1
      %p122 = por %p120, %p121
      %p123 = scmp.ne.s32.totalorder %s114, %s115
      %p124 = scmp.eq.s32.totalorder %s20, 0
      %p125 = por %p123, %p124
      %p126 = scmp.ne.s32.totalorder %s114, %s115
      %p127 = scmp.eq.s32.totalorder %s21, 1
      %p128 = por %p126, %p127
      %p130 = scmp.ne.s32.totalorder %s115, %s129
      %p131 = scmp.eq.s32.totalorder %s21, 0
      %p132 = por %p130, %p131
      %s133 = ssub.s32 %s15, %s22
      %p134 = scmp.eq.s32.totalorder %s133, 0
      %s136 = sadd.s32 %s135, 1
      %s137 = scalar_select %p134, %s135, %s136
      %p140 = pneg %p134
      %p141 = scmp.eq.s32.totalorder %s15, 1
      %p142 = por %p140, %p141
      %p143 = scmp.ne.s32.totalorder %s135, %s138
      %p144 = scmp.eq.s32.totalorder %s15, 0
      %p145 = por %p143, %p144
      %p146 = scmp.ne.s32.totalorder %s135, %s138
      %p147 = scmp.eq.s32.totalorder %s20, 1
      %p148 = por %p146, %p147
      %p149 = scmp.ne.s32.totalorder %s138, %s139
      %p150 = scmp.eq.s32.totalorder %s20, 0
      %p151 = por %p149, %p150
      %p152 = scmp.ne.s32.totalorder %s138, %s139
      %p153 = scmp.eq.s32.totalorder %s21, 1
      %p154 = por %p152, %p153
      %p156 = scmp.ne.s32.totalorder %s139, %s155
      %p157 = scmp.eq.s32.totalorder %s21, 0
      %p158 = por %p156, %p157
      %p159 = scmp.le.s32.totalorder 1, %s15
      %p160 = scmp.lt.s32.totalorder %s15, 3
      %p161 = pnand %p159, %p160
      %p162 = pneg %p161
      // Predicated region
      $region9: #{tpu_custom_call.1} parent=5 // pred_check
        _
      $region10: #{tpu_custom_call.1} parent=5 // pred_check_branch
        %164 = sbr.rel (%p161) target = $region12
      $region11: #{tpu_custom_call.1} parent=5 // pred_region
        %s165 = ssub.s32 %s15, 1
        // Predicated region
        $region13: #{tpu_custom_call.1} parent=11 // pred_check
          %p166 = pneg %p62
        $region14: #{tpu_custom_call.1} parent=11 // pred_check_branch
          %168 = sbr.rel (%p166) target = $region16
        $region15: #{tpu_custom_call.1} parent=11 // pred_region
          %s170 = ssub.s32 512, 512
          %171 = vsyncadd [#allocation5], %s170
          %s172 = sshll.u32 [#allocation4], 4
          %s173 = int_to_ptr.vmem [resolvable:$true] %s172
          %178 = dma.hbm_to_vmem [thread:$0]  %s1, 512, %s173, [#allocation5], 128, 128, 8
        $region16: #{tpu_custom_call.1} parent=11 // pred_fallthru
          _
        // Predicated region
        $region17: #{tpu_custom_call.1} parent=11 // pred_check
          %p179 = pneg %p83
        $region18: #{tpu_custom_call.1} parent=11 // pred_check_branch
          %181 = sbr.rel (%p179) target = $region20
        $region19: #{tpu_custom_call.1} parent=11 // pred_region
          _
        $region20: #{tpu_custom_call.1} parent=11 // pred_fallthru
          _
        // Predicated region
        $region21: #{tpu_custom_call.1} parent=11 // pred_check
          %p182 = pneg %p104
        $region22: #{tpu_custom_call.1} parent=11 // pred_check_branch
          %184 = sbr.rel (%p182) target = $region24
        $region23: #{tpu_custom_call.1} parent=11 // pred_region
          %s186 = ssub.s32 2048, 2048
          %187 = vsyncadd [#allocation5], %s186
          %s188 = sshll.u32 [#allocation6], 4
          %s189 = int_to_ptr.vmem [resolvable:$true] %s188
          %194 = dma.hbm_to_vmem [thread:$0]  %s3, 2048, %s189, [#allocation5], 128, 128, 8
        $region24: #{tpu_custom_call.1} parent=11 // pred_fallthru
          _
        // Predicated region
        $region25: #{tpu_custom_call.1} parent=11 // pred_check
          %p195 = pneg %p125
        $region26: #{tpu_custom_call.1} parent=11 // pred_check_branch
          %197 = sbr.rel (%p195) target = $region28
        $region27: #{tpu_custom_call.1} parent=11 // pred_region
          _
        $region28: #{tpu_custom_call.1} parent=11 // pred_fallthru
          _
      $region12: #{tpu_custom_call.1} parent=5 // pred_fallthru
        _
      %p198 = scmp.lt.s32.totalorder %s15, 2
      // Predicated region
      $region29: #{tpu_custom_call.1} parent=5 // pred_check
        %p199 = pneg %p198
      $region30: #{tpu_custom_call.1} parent=5 // pred_check_branch
        %201 = sbr.rel (%p199) target = $region32
      $region31: #{tpu_custom_call.1} parent=5 // pred_region
        // Predicated region
        $region33: #{tpu_custom_call.1} parent=31 // pred_check
          %p202 = pneg %p35
        $region34: #{tpu_custom_call.1} parent=31 // pred_check_branch
          %204 = sbr.rel (%p202) target = $region36
        $region35: #{tpu_custom_call.1} parent=31 // pred_region
          %s205 = sand.u32 %s25, 1
          %s206 = scalar_lea.sflag [#allocation3], %s205
          %s207 = sand.u32 %s25, 1
          %s208 = smul.addr %s207, 8
          %s209 = scalar_lea.vmem [#allocation2], %s208
          %s211 = ssub.s32 128, 128
          %212 = vsyncadd %s206, %s211
          %s213 = smul.addr %s15, 128
          %s214 = scalar_lea.hbm %s0, %s213
          %s216 = sshll.u32 %s209, 4
          %s217 = int_to_ptr.vmem [resolvable:$true] %s216
          %219 = dma.hbm_to_vmem [thread:$0]  %s214, 128, %s217, %s206
        $region36: #{tpu_custom_call.1} parent=31 // pred_fallthru
          _
      $region32: #{tpu_custom_call.1} parent=5 // pred_fallthru
        _
      %p220 = scmp.le.s32.totalorder 1, %s15
      %p221 = scmp.lt.s32.totalorder %s15, 3
      %p222 = pnand %p220, %p221
      %p223 = pneg %p222
      // Predicated region
      $region37: #{tpu_custom_call.1} parent=5 // pred_check
        _
      $region38: #{tpu_custom_call.1} parent=5 // pred_check_branch
        %225 = sbr.rel (%p222) target = $region40
      $region39: #{tpu_custom_call.1} parent=5 // pred_region
        %s226 = ssub.s32 %s15, 1
        %s227 = sand.u32 %s28, 1
        %s228 = scalar_lea.sflag [#allocation3], %s227
        %s229 = sand.u32 %s28, 1
        %s230 = smul.addr %s229, 8
        %s231 = scalar_lea.vmem [#allocation2], %s230
        // Predicated region
        $region41: #{tpu_custom_call.1} parent=39 // pred_check
          %p232 = pneg %p41
        $region42: #{tpu_custom_call.1} parent=39 // pred_check_branch
          %234 = sbr.rel (%p232) target = $region44
        $region43: #{tpu_custom_call.1} parent=39 // pred_region
          %235 = dma.done %s228, 128
        $region44: #{tpu_custom_call.1} parent=39 // pred_fallthru
          _
        // Predicated region
        $region45: #{tpu_custom_call.1} parent=39 // pred_check
          %p236 = pneg %p62
        $region46: #{tpu_custom_call.1} parent=39 // pred_check_branch
          %238 = sbr.rel (%p236) target = $region48
        $region47: #{tpu_custom_call.1} parent=39 // pred_region
          %239 = dma.done [#allocation5], 512
        $region48: #{tpu_custom_call.1} parent=39 // pred_fallthru
          _
        // Predicated region
        $region49: #{tpu_custom_call.1} parent=39 // pred_check
          %p240 = pneg %p104
        $region50: #{tpu_custom_call.1} parent=39 // pred_check_branch
          %242 = sbr.rel (%p240) target = $region52
        $region51: #{tpu_custom_call.1} parent=39 // pred_region
          %243 = dma.done [#allocation5], 2048
        $region52: #{tpu_custom_call.1} parent=39 // pred_fallthru
          _
        %s244 = sand.u32 %s28, 1
        %s245 = scalar_lea.sflag [#allocation3], %s244
        %s246 = sand.u32 %s28, 1
        %s247 = smul.addr %s246, 8
        %s248 = scalar_lea.vmem [#allocation2], %s247
        %p249 = pneg %p41
        %p250 = pneg %p38
        %p251 = pneg %p62
        %p252 = pneg %p59
        %p253 = pneg %p83
        %p254 = pneg %p80
        %p255 = pneg %p104
        %p256 = pneg %p101
        %p257 = pneg %p125
        %p258 = pneg %p122
        %p259 = pneg %p151
        %p260 = pneg %p148
        %p261 = scmp.lt.s32.totalorder %s20, 1
        %s262 = scalar_select %p261, %s20, 1
        %s263 = smul.addr %s262, 8
        %s264 = scalar_lea.vmem %s5, %s263
        %p265 = scmp.lt.s32.totalorder %s20, 1
        %s266 = scalar_select %p265, %s20, 1
        %s267 = smul.addr %s266, 8
        %s268 = scalar_lea.vmem %s5, %s267
        %v269 = vld [vmem:[%s231] sm:$0xff]
        %v270 = vld [vmem:[#allocation4] sm:$0xff]
        %v271 = vld [vmem:[#allocation4 + $0x8] sm:$0xff]
        %v272 = vld [vmem:[#allocation4 + $0x10] sm:$0xff]
        %v273 = vld [vmem:[#allocation4 + $0x18] sm:$0xff]
        %v274 = vld [vmem:[%s2] sm:$0x1]
        %v276 = vlaneseq
        %v277 = vshrl.u32 %v276, 7
        %v278 = vsub.s32 0, %v277
        %v279 = vrot.slane %v274, %v278
        %vm281 = vcmask 261120
        %v283 = vsel %vm281, %v269, 0
        %285 = vmatprep.subr.mxu0 0.0
        %286 = vmatpush1.msra.mxu0 0.0
        %287 = vmatprep.subr.mxu0 0.0
        %288 = vmatpush1.msra.mxu0 0.0
        %289 = vmatprep.subr.mxu0 0.0
        %290 = vmatpush1.msra.mxu0 0.0
        %291 = vmatprep.subr.mxu0 0.0
        %292 = vmatpush1.msra.mxu0 0.0
        %293 = vmatprep.subr.mxu0 0.0
        %294 = vmatpush1.msra.mxu0 0.0
        %295 = vmatprep.subr.mxu0 0.0
        %296 = vmatpush1.msra.mxu0 0.0
        %297 = vmatprep.subr.mxu0 0.0
        %298 = vmatpush1.msra.mxu0 0.0
        %299 = vmatprep.subr.mxu0 0.0
        %300 = vmatpush1.msra.mxu0 0.0
        %301 = vmatprep.subr.mxu0 0.0
        %302 = vmatpush1.msra.mxu0 0.0
        %303 = vmatprep.subr.mxu0 0.0
        %304 = vmatpush1.msra.mxu0 0.0
        %305 = vmatprep.subr.mxu0 0.0
        %306 = vmatpush1.msra.mxu0 0.0
        %307 = vmatprep.subr.mxu0 0.0
        %308 = vmatpush1.msra.mxu0 0.0
        %309 = vmatprep.subr.mxu0 0.0
        %310 = vmatpush1.msra.mxu0 %v273
        %311 = vmatprep.subr.mxu0 0.0
        %312 = vmatpush1.msra.mxu0 %v272
        %313 = vmatprep.subr.mxu0 0.0
        %314 = vmatpush1.msra.mxu0 %v271
        %315 = vmatprep.subr.mxu0 0.0
        %316 = vmatpush1.msra.mxu0 %v270
        %317 = vmatprep.subr.mxu0 0.0
        %318 = vmatpush2.msra.mxu0 0.0
        %319 = vmatprep.subr.mxu0 0.0
        %320 = vmatpush2.msra.mxu0 0.0
        %321 = vmatprep.subr.mxu0 0.0
        %322 = vmatpush2.msra.mxu0 0.0
        %323 = vmatprep.subr.mxu0 0.0
        %324 = vmatpush2.msra.mxu0 0.0
        %325 = vmatprep.subr.mxu0 0.0
        %326 = vmatpush2.msra.mxu0 0.0
        %327 = vmatprep.subr.mxu0 0.0
        %328 = vmatpush2.msra.mxu0 0.0
        %329 = vmatprep.subr.mxu0 0.0
        %330 = vmatpush2.msra.mxu0 0.0
        %331 = vmatprep.subr.mxu0 0.0
        %332 = vmatpush2.msra.mxu0 0.0
        %333 = vmatprep.subr.mxu0 0.0
        %334 = vmatpush2.msra.mxu0 0.0
        %335 = vmatprep.subr.mxu0 0.0
        %336 = vmatpush2.msra.mxu0 0.0
        %337 = vmatprep.subr.mxu0 0.0
        %338 = vmatpush2.msra.mxu0 0.0
        %339 = vmatprep.subr.mxu0 0.0
        %340 = vmatpush2.msra.mxu0 0.0
        %341 = vmatprep.subr.mxu0 0.0
        %342 = vmatpush2.msra.mxu0 0.0
        %343 = vmatprep.subr.mxu0 0.0
        %344 = vmatpush2.msra.mxu0 0.0
        %345 = vmatprep.subr.mxu0 0.0
        %346 = vmatpush2.msra.mxu0 0.0
        %347 = vmatprep.subr.mxu0 0.0
        %348 = vmatpush2.msra.mxu0 0.0
        %349 = vmatprep.mubr.f32.mxu0 0.0
        %350 = vmatmul.mubr.f32.gmra.mxu0 %v283
        %v351 = vpop.f32.mrf.mxu0
        %v352 = vadd.f32 %v279, %v351
        %v353 = vpop.f32.mrf.mxu0
        %354 = vdwg.mxu0
        %v355 = vmax.f32 %v352, 0.0
        %v356 = vld [vmem:[#allocation6] sm:$0xff]
        %v357 = vld [vmem:[#allocation6 + $0x8] sm:$0xff]
        %v358 = vld [vmem:[#allocation6 + $0x10] sm:$0xff]
        %v359 = vld [vmem:[#allocation6 + $0x18] sm:$0xff]
        %v360 = vld [vmem:[#allocation6 + $0x20] sm:$0xff]
        %v361 = vld [vmem:[#allocation6 + $0x28] sm:$0xff]
        %v362 = vld [vmem:[#allocation6 + $0x30] sm:$0xff]
        %v363 = vld [vmem:[#allocation6 + $0x38] sm:$0xff]
        %v364 = vld [vmem:[#allocation6 + $0x40] sm:$0xff]
        %v365 = vld [vmem:[#allocation6 + $0x48] sm:$0xff]
        %v366 = vld [vmem:[#allocation6 + $0x50] sm:$0xff]
        %v367 = vld [vmem:[#allocation6 + $0x58] sm:$0xff]
        %v368 = vld [vmem:[#allocation6 + $0x60] sm:$0xff]
        %v369 = vld [vmem:[#allocation6 + $0x68] sm:$0xff]
        %v370 = vld [vmem:[#allocation6 + $0x70] sm:$0xff]
        %v371 = vld [vmem:[#allocation6 + $0x78] sm:$0xff]
        %v372 = vld [vmem:[%s4] sm:$0x1]
        %v374 = vlaneseq
        %v375 = vshrl.u32 %v374, 7
        %v376 = vsub.s32 0, %v375
        %v377 = vrot.slane %v372, %v376
        %379 = vmatprep.subr.mxu0 0.0
        %380 = vmatpush1.msra.mxu0 %v371
        %381 = vmatprep.subr.mxu0 0.0
        %382 = vmatpush1.msra.mxu0 %v370
        %383 = vmatprep.subr.mxu0 0.0
        %384 = vmatpush1.msra.mxu0 %v369
        %385 = vmatprep.subr.mxu0 0.0
        %386 = vmatpush1.msra.mxu0 %v368
        %387 = vmatprep.subr.mxu0 0.0
        %388 = vmatpush1.msra.mxu0 %v367
        %389 = vmatprep.subr.mxu0 0.0
        %390 = vmatpush1.msra.mxu0 %v366
        %391 = vmatprep.subr.mxu0 0.0
        %392 = vmatpush1.msra.mxu0 %v365
        %393 = vmatprep.subr.mxu0 0.0
        %394 = vmatpush1.msra.mxu0 %v364
        %395 = vmatprep.subr.mxu0 0.0
        %396 = vmatpush1.msra.mxu0 %v363
        %397 = vmatprep.subr.mxu0 0.0
        %398 = vmatpush1.msra.mxu0 %v362
        %399 = vmatprep.subr.mxu0 0.0
        %400 = vmatpush1.msra.mxu0 %v361
        %401 = vmatprep.subr.mxu0 0.0
        %402 = vmatpush1.msra.mxu0 %v360
        %403 = vmatprep.subr.mxu0 0.0
        %404 = vmatpush1.msra.mxu0 %v359
        %405 = vmatprep.subr.mxu0 0.0
        %406 = vmatpush1.msra.mxu0 %v358
        %407 = vmatprep.subr.mxu0 0.0
        %408 = vmatpush1.msra.mxu0 %v357
        %409 = vmatprep.subr.mxu0 0.0
        %410 = vmatpush1.msra.mxu0 %v356
        %411 = vmatprep.subr.mxu0 0.0
        %412 = vmatpush2.msra.mxu0 0.0
        %413 = vmatprep.subr.mxu0 0.0
        %414 = vmatpush2.msra.mxu0 0.0
        %415 = vmatprep.subr.mxu0 0.0
        %416 = vmatpush2.msra.mxu0 0.0
        %417 = vmatprep.subr.mxu0 0.0
        %418 = vmatpush2.msra.mxu0 0.0
        %419 = vmatprep.subr.mxu0 0.0
        %420 = vmatpush2.msra.mxu0 0.0
        %421 = vmatprep.subr.mxu0 0.0
        %422 = vmatpush2.msra.mxu0 0.0
        %423 = vmatprep.subr.mxu0 0.0
        %424 = vmatpush2.msra.mxu0 0.0
        %425 = vmatprep.subr.mxu0 0.0
        %426 = vmatpush2.msra.mxu0 0.0
        %427 = vmatprep.subr.mxu0 0.0
        %428 = vmatpush2.msra.mxu0 0.0
        %429 = vmatprep.subr.mxu0 0.0
        %430 = vmatpush2.msra.mxu0 0.0
        %431 = vmatprep.subr.mxu0 0.0
        %432 = vmatpush2.msra.mxu0 0.0
        %433 = vmatprep.subr.mxu0 0.0
        %434 = vmatpush2.msra.mxu0 0.0
        %435 = vmatprep.subr.mxu0 0.0
        %436 = vmatpush2.msra.mxu0 0.0
        %437 = vmatprep.subr.mxu0 0.0
        %438 = vmatpush2.msra.mxu0 0.0
        %439 = vmatprep.subr.mxu0 0.0
        %440 = vmatpush2.msra.mxu0 0.0
        %441 = vmatprep.subr.mxu0 0.0
        %442 = vmatpush2.msra.mxu0 0.0
        %443 = vmatprep.mubr.f32.mxu0 0.0
        %444 = vmatmul.mubr.f32.gmra.mxu0 %v355
        %v445 = vpop.f32.mrf.mxu0
        %v446 = vadd.f32 %v377, %v445
        %v447 = vpop.f32.mrf.mxu0
        %448 = vdwg.mxu0
        %vm449 = vcmask 31744
        %450 = vst.msk [vmem:[%s268] sm:$0xff] %vm449, %v446
        %p451 = scmp.lt.s32.totalorder %s20, 1
        %s452 = scalar_select %p451, %s20, 1
        %s453 = smul.addr %s452, 8
        %s454 = scalar_lea.vmem %s5, %s453
        // Predicated region
        $region53: #{tpu_custom_call.1} parent=39 // pred_check
          %p455 = pneg %p148
        $region54: #{tpu_custom_call.1} parent=39 // pred_check_branch
          %457 = sbr.rel (%p455) target = $region56
        $region55: #{tpu_custom_call.1} parent=39 // pred_region
          _
        $region56: #{tpu_custom_call.1} parent=39 // pred_fallthru
          _
      $region40: #{tpu_custom_call.1} parent=5 // pred_fallthru
        _
      %p458 = scmp.le.s32.totalorder 2, %s15
      // Predicated region
      $region57: #{tpu_custom_call.1} parent=5 // pred_check
        %p459 = pneg %p458
      $region58: #{tpu_custom_call.1} parent=5 // pred_check_branch
        %461 = sbr.rel (%p459) target = $region60
      $region59: #{tpu_custom_call.1} parent=5 // pred_region
        %s462 = ssub.s32 %s15, 2
        // Predicated region
        $region61: #{tpu_custom_call.1} parent=59 // pred_check
          %p463 = pneg %p154
        $region62: #{tpu_custom_call.1} parent=59 // pred_check_branch
          %465 = sbr.rel (%p463) target = $region64
        $region63: #{tpu_custom_call.1} parent=59 // pred_region
          %p466 = scmp.lt.s32.totalorder %s21, 1
          %s467 = scalar_select %p466, %s21, 1
          %s468 = smul.addr %s467, 8
          %s469 = scalar_lea.vmem %s5, %s468
        $region64: #{tpu_custom_call.1} parent=59 // pred_fallthru
          _
      $region60: #{tpu_custom_call.1} parent=5 // pred_fallthru
        _
    $region6: #{tpu_custom_call.1} parent=1 // loop_footer
      %s19 = sadd.s32 1, %s15
    $region7: #{tpu_custom_call.1} parent=1 // loop_footer_branch
      %14 = sbr.rel target = $region3
    $region8: #{tpu_custom_call.1} parent=1 // loop_exit
      _
    %470 = vsyncpa [#allocation3], 1
    %s471 = scalar_lea.sflag [#allocation3], 1
    %472 = vsyncpa %s471, 1
    %473 = vsyncpa [#allocation5], 1

</llo_original>
